<compile_context>
chip_gen: v7x
topology: tpu7x:2x2x1
jax: 0.10.0
libtpu: 0.0.40
codegen_flags: <defaults>
</compile_context>

<pallas_src>
import jax
import jax.numpy as jnp
from jax.experimental import pallas as pl
from jax.experimental.pallas import tpu as pltpu


HIDDEN = 256


def _round_up(x, m):
    return ((x + m - 1) // m) * m


def _actor_kernel(ma_ref, s_ref, w1_ref, b1_ref, w2_ref, b2_ref,
                  w3_ref, b3_ref, o_ref):
    max_action = ma_ref[0, 0]                       # scalar from SMEM

    # Feed the MXU bf16 operands, accumulate in f32.
    x = s_ref[...].astype(jnp.bfloat16)

    h1 = jnp.dot(x, w1_ref[...], preferred_element_type=jnp.float32) + b1_ref[...]
    h1 = jnp.maximum(h1, 0.0).astype(jnp.bfloat16)

    h2 = jnp.dot(h1, w2_ref[...], preferred_element_type=jnp.float32) + b2_ref[...]
    h2 = jnp.maximum(h2, 0.0).astype(jnp.bfloat16)

    h3 = jnp.dot(h2, w3_ref[...], preferred_element_type=jnp.float32) + b3_ref[...]

    # Lane-dense (tile_b, 128) store; padded columns are exactly tanh(0) = 0.
    o_ref[...] = (max_action * jnp.tanh(h3)).astype(o_ref.dtype)


def actor_forward(state, params, max_action, *, tile_b_max=256):
    """state: [B, state_dim] float32.  params: dict of w1,b1,w2,b2,w3,b3
    (weights stored [in, out], i.e. transposed vs. torch's [out, in])."""
    B, state_dim = state.shape
    action_dim = params["w3"].shape[1]

    # bf16 weights (f32 accumulation happens inside the kernel).
    w1 = params["w1"].astype(jnp.bfloat16)
    w2 = params["w2"].astype(jnp.bfloat16)

    # Biases kept 2D ([1, F], f32) so they map cleanly onto (sublane, lane).
    b1 = params["b1"].reshape(1, -1).astype(jnp.float32)
    b2 = params["b2"].reshape(1, -1).astype(jnp.float32)
    b3 = params["b3"].reshape(1, -1).astype(jnp.float32)

    # Lane-dense output: pad final layer to a multiple of 128 lanes.
    out_pad = _round_up(max(action_dim, 128), 128)
    w3p = jnp.zeros((HIDDEN, out_pad), jnp.float32)
    w3p = w3p.at[:, :action_dim].set(params["w3"].astype(jnp.float32))
    w3p = w3p.astype(jnp.bfloat16)
    b3p = jnp.zeros((1, out_pad), jnp.float32).at[:, :action_dim].set(b3)

    # Batch tiling: 8-aligned tile, batch zero-padded up to a tile multiple.
    tile_b = min(tile_b_max, _round_up(B, 8))
    b_pad = _round_up(B, tile_b)
    state_p = state.astype(jnp.float32)
    if b_pad != B:
        state_p = jnp.zeros((b_pad, state_dim), jnp.float32).at[:B].set(state_p)

    # max_action as an SMEM scalar (no recompile per value, trace-safe).
    ma = jnp.full((1, 1), max_action, dtype=jnp.float32)

    grid = (b_pad // tile_b,)

    def resident(shape):
        # Weights / biases: same block at every grid step -> stay VMEM-resident.
        return pl.BlockSpec(shape, lambda i: (0,) * len(shape))

    out = pl.pallas_call(
        _actor_kernel,
        out_shape=jax.ShapeDtypeStruct((b_pad, out_pad), jnp.float32),
        grid=grid,
        in_specs=[
            pl.BlockSpec(memory_space=pltpu.SMEM),                 # max_action
            pl.BlockSpec((tile_b, state_dim), lambda i: (i, 0)),   # state tile
            resident(w1.shape), resident(b1.shape),
            resident(w2.shape), resident(b2.shape),
            resident(w3p.shape), resident(b3p.shape),
        ],
        out_specs=pl.BlockSpec((tile_b, out_pad), lambda i: (i, 0)),
        compiler_params=pltpu.CompilerParams(
            dimension_semantics=("parallel",)),      # v7x: 2 TCs split the batch
    )(ma, state_p, w1, b1, w2, b2, w3p, b3p)

    return out[:B, :action_dim]


def init_actor_params(key, state_dim, action_dim):
    """Deterministic init mimicking torch.nn.Linear (uniform +/- 1/sqrt(fan_in)).
    Weights stored as [in, out] (transposed vs. torch's [out, in])."""
    keys = jax.random.split(key, 6)

    def linear(kw, kb, fan_in, fan_out):
        bound = 1.0 / jnp.sqrt(fan_in)
        w = jax.random.uniform(kw, (fan_in, fan_out), jnp.float32, -bound, bound)
        b = jax.random.uniform(kb, (fan_out,), jnp.float32, -bound, bound)
        return w, b

    w1, b1 = linear(keys[0], keys[1], state_dim, HIDDEN)
    w2, b2 = linear(keys[2], keys[3], HIDDEN, HIDDEN)
    w3, b3 = linear(keys[4], keys[5], HIDDEN, action_dim)
    return dict(w1=w1, b1=b1, w2=w2, b2=b2, w3=w3, b3=b3)


def actor_reference(state, params, max_action):
    # Mirror the kernel's bf16 weight storage so the check isolates kernel
    # correctness (remaining delta is only the bf16 activation feed to the MXU).
    w1 = params["w1"].astype(jnp.bfloat16).astype(jnp.float32)
    w2 = params["w2"].astype(jnp.bfloat16).astype(jnp.float32)
    w3 = params["w3"].astype(jnp.bfloat16).astype(jnp.float32)
    h1 = jnp.maximum(state @ w1 + params["b1"], 0.0)
    h2 = jnp.maximum(h1 @ w2 + params["b2"], 0.0)
    return max_action * jnp.tanh(h2 @ w3 + params["b3"])


if __name__ == "__main__":
    key = jax.random.PRNGKey(0)
    k_state, k_params = jax.random.split(key)

    batch = 2
    state_dim = 17      # e.g. a small robot observation vector
    action_dim = 6
    max_action = 1.0

    state = jax.random.normal(k_state, (batch, state_dim), jnp.float32)
    params = init_actor_params(k_params, state_dim, action_dim)

    out = actor_forward(state, params, max_action)
    out = jax.block_until_ready(out)

    ref = actor_reference(state, params, max_action)
    assert out.shape == (batch, action_dim)
    # bf16 weight/activation feed => looser-than-f32 tolerance (tanh-bounded).
    assert jnp.allclose(out, ref, atol=2e-2, rtol=2e-2)

    print("KERNEL_OK")
</pallas_src>

<mosaic_0001>
module attributes {stable_mosaic.version = 11 : i64} {
  func.func @_actor_kernel(%arg0: i32, %arg1: memref<1x1xf32, #tpu.memory_space<smem>>, %arg2: memref<8x17xf32, #tpu.memory_space<vmem>>, %arg3: memref<17x256xbf16, #tpu.memory_space<vmem>>, %arg4: memref<1x256xf32, #tpu.memory_space<vmem>>, %arg5: memref<256x256xbf16, #tpu.memory_space<vmem>>, %arg6: memref<1x256xf32, #tpu.memory_space<vmem>>, %arg7: memref<256x128xbf16, #tpu.memory_space<vmem>>, %arg8: memref<1x128xf32, #tpu.memory_space<vmem>>, %arg9: memref<8x128xf32, #tpu.memory_space<vmem>>) attributes {dimension_semantics = [#tpu.dimension_semantics<parallel>], iteration_bounds = array<i64: 1>, scalar_prefetch = 0 : i64, scratch_operands = 0 : i64, tpu.core_type = #tpu.core_type<tc>, window_params = [{transform_indices = @transform_0, window_bounds = array<i64: 1, 1>}, {transform_indices = @transform_1, window_bounds = array<i64: 8, 17>}, {pipeline_mode = #tpu.pipeline_mode<synchronous>, transform_indices = @transform_2, window_bounds = array<i64: 17, 256>}, {pipeline_mode = #tpu.pipeline_mode<synchronous>, transform_indices = @transform_3, window_bounds = array<i64: 1, 256>}, {pipeline_mode = #tpu.pipeline_mode<synchronous>, transform_indices = @transform_4, window_bounds = array<i64: 256, 256>}, {pipeline_mode = #tpu.pipeline_mode<synchronous>, transform_indices = @transform_5, window_bounds = array<i64: 1, 256>}, {pipeline_mode = #tpu.pipeline_mode<synchronous>, transform_indices = @transform_6, window_bounds = array<i64: 256, 128>}, {pipeline_mode = #tpu.pipeline_mode<synchronous>, transform_indices = @transform_7, window_bounds = array<i64: 1, 128>}, {transform_indices = @transform_8, window_bounds = array<i64: 8, 128>}]} {
    %c0 = arith.constant 0 : index
    %c0_0 = arith.constant 0 : index
    %0 = memref.load %arg1[%c0, %c0_0] : memref<1x1xf32, #tpu.memory_space<smem>>
    %c0_1 = arith.constant 0 : index
    %c0_2 = arith.constant 0 : index
    %1 = vector.load %arg2[%c0_1, %c0_2] : memref<8x17xf32, #tpu.memory_space<vmem>>, vector<8x17xf32>
    %2 = arith.truncf %1 : vector<8x17xf32> to vector<8x17xbf16>
    %c0_3 = arith.constant 0 : index
    %c0_4 = arith.constant 0 : index
    %3 = vector.load %arg3[%c0_3, %c0_4] : memref<17x256xbf16, #tpu.memory_space<vmem>>, vector<17x256xbf16>
    %cst = arith.constant dense<0.000000e+00> : vector<8x256xf32>
    %4 = tpu.matmul %2, %3, %cst {dimension_numbers = #tpu.dot_dimension_numbers<[1], [0], [0], [1], [0, 0, 1, 1], [], []>} : vector<8x17xbf16>, vector<17x256xbf16>, vector<8x256xf32> -> vector<8x256xf32>
    %c0_5 = arith.constant 0 : index
    %c0_6 = arith.constant 0 : index
    %5 = vector.load %arg4[%c0_5, %c0_6] : memref<1x256xf32, #tpu.memory_space<vmem>>, vector<1x256xf32>
    %6 = vector.broadcast %5 : vector<1x256xf32> to vector<8x256xf32>
    %7 = arith.addf %4, %6 : vector<8x256xf32>
    %cst_7 = arith.constant 0.000000e+00 : f32
    %8 = vector.broadcast %cst_7 : f32 to vector<8x256xf32>
    %9 = arith.maximumf %7, %8 : vector<8x256xf32>
    %10 = arith.truncf %9 : vector<8x256xf32> to vector<8x256xbf16>
    %c0_8 = arith.constant 0 : index
    %c0_9 = arith.constant 0 : index
    %11 = vector.load %arg5[%c0_8, %c0_9] : memref<256x256xbf16, #tpu.memory_space<vmem>>, vector<256x256xbf16>
    %cst_10 = arith.constant dense<0.000000e+00> : vector<8x256xf32>
    %12 = tpu.matmul %10, %11, %cst_10 {dimension_numbers = #tpu.dot_dimension_numbers<[1], [0], [0], [1], [0, 0, 1, 1], [], []>} : vector<8x256xbf16>, vector<256x256xbf16>, vector<8x256xf32> -> vector<8x256xf32>
    %c0_11 = arith.constant 0 : index
    %c0_12 = arith.constant 0 : index
    %13 = vector.load %arg6[%c0_11, %c0_12] : memref<1x256xf32, #tpu.memory_space<vmem>>, vector<1x256xf32>
    %14 = vector.broadcast %13 : vector<1x256xf32> to vector<8x256xf32>
    %15 = arith.addf %12, %14 : vector<8x256xf32>
    %cst_13 = arith.constant 0.000000e+00 : f32
    %16 = vector.broadcast %cst_13 : f32 to vector<8x256xf32>
    %17 = arith.maximumf %15, %16 : vector<8x256xf32>
    %18 = arith.truncf %17 : vector<8x256xf32> to vector<8x256xbf16>
    %c0_14 = arith.constant 0 : index
    %c0_15 = arith.constant 0 : index
    %19 = vector.load %arg7[%c0_14, %c0_15] : memref<256x128xbf16, #tpu.memory_space<vmem>>, vector<256x128xbf16>
    %cst_16 = arith.constant dense<0.000000e+00> : vector<8x128xf32>
    %20 = tpu.matmul %18, %19, %cst_16 {dimension_numbers = #tpu.dot_dimension_numbers<[1], [0], [0], [1], [0, 0, 1, 1], [], []>} : vector<8x256xbf16>, vector<256x128xbf16>, vector<8x128xf32> -> vector<8x128xf32>
    %c0_17 = arith.constant 0 : index
    %c0_18 = arith.constant 0 : index
    %21 = vector.load %arg8[%c0_17, %c0_18] : memref<1x128xf32, #tpu.memory_space<vmem>>, vector<1x128xf32>
    %22 = vector.broadcast %21 : vector<1x128xf32> to vector<8x128xf32>
    %23 = arith.addf %20, %22 : vector<8x128xf32>
    %24 = math.tanh %23 : vector<8x128xf32>
    %25 = vector.broadcast %0 : f32 to vector<8x128xf32>
    %26 = arith.mulf %25, %24 : vector<8x128xf32>
    %c0_19 = arith.constant 0 : index
    %c0_20 = arith.constant 0 : index
    %27 = vector.load %arg9[%c0_19, %c0_20] : memref<8x128xf32, #tpu.memory_space<vmem>>, vector<8x128xf32>
    tpu.vector_store %arg9[%c0_19, %c0_20], %26 {strides = array<i32>} : memref<8x128xf32, #tpu.memory_space<vmem>>, vector<8x128xf32>,
    return
  }
  func.func @transform_0(%arg0: i32) -> (i32, i32) {
    %c0_i32 = arith.constant 0 : i32
    %c0_i32_0 = arith.constant 0 : i32
    %c0_i32_1 = arith.constant 0 : i32
    return %c0_i32, %c0_i32_0 : i32, i32
  }
  func.func @transform_1(%arg0: i32) -> (i32, i32) {
    %c0_i32 = arith.constant 0 : i32
    %c0_i32_0 = arith.constant 0 : i32
    return %arg0, %c0_i32 : i32, i32
  }
  func.func @transform_2(%arg0: i32) -> (i32, i32) {
    %c0_i32 = arith.constant 0 : i32
    %c0_i32_0 = arith.constant 0 : i32
    %c0_i32_1 = arith.constant 0 : i32
    return %c0_i32, %c0_i32_0 : i32, i32
  }
  func.func @transform_3(%arg0: i32) -> (i32, i32) {
    %c0_i32 = arith.constant 0 : i32
    %c0_i32_0 = arith.constant 0 : i32
    %c0_i32_1 = arith.constant 0 : i32
    return %c0_i32, %c0_i32_0 : i32, i32
  }
  func.func @transform_4(%arg0: i32) -> (i32, i32) {
    %c0_i32 = arith.constant 0 : i32
    %c0_i32_0 = arith.constant 0 : i32
    %c0_i32_1 = arith.constant 0 : i32
    return %c0_i32, %c0_i32_0 : i32, i32
  }
  func.func @transform_5(%arg0: i32) -> (i32, i32) {
    %c0_i32 = arith.constant 0 : i32
    %c0_i32_0 = arith.constant 0 : i32
    %c0_i32_1 = arith.constant 0 : i32
    return %c0_i32, %c0_i32_0 : i32, i32
  }
  func.func @transform_6(%arg0: i32) -> (i32, i32) {
    %c0_i32 = arith.constant 0 : i32
    %c0_i32_0 = arith.constant 0 : i32
    %c0_i32_1 = arith.constant 0 : i32
    return %c0_i32, %c0_i32_0 : i32, i32
  }
  func.func @transform_7(%arg0: i32) -> (i32, i32) {
    %c0_i32 = arith.constant 0 : i32
    %c0_i32_0 = arith.constant 0 : i32
    %c0_i32_1 = arith.constant 0 : i32
    return %c0_i32, %c0_i32_0 : i32, i32
  }
  func.func @transform_8(%arg0: i32) -> (i32, i32) {
    %c0_i32 = arith.constant 0 : i32
    %c0_i32_0 = arith.constant 0 : i32
    return %arg0, %c0_i32 : i32, i32
  }
}

</mosaic_0001>

<llo_original>
// kernel: tpu_custom_call.1
$region0: #{tpu_custom_call.1}
  #allocation0 [shape = 'u32[]', space=smem, size = 0x4, offset = 0x4, fixed_abs, tag = 'smem constant byte address 0x4 - core index']
  #allocation1 [shape = 'u32[144,128]{1,0:T(1,128)}', space=vmem, size = 0x12000, scoped, tag = 'internal scratch']
  #allocation2 [shape = 'f32[1,1]{1,0:T(1,128)S(6)}', space=smem, size = 0x200, scoped, tag = 'scoped memory for tpu_custom_call.1']
  %s0 = inlined_call_operand.<no memory space> [shape: f32[1,1], index: 0, kind: input, shape index: {}]
  %s1 = inlined_call_operand.hbm [shape: f32[8,17], index: 1, kind: input, shape index: {}]
  %s2 = inlined_call_operand.hbm [shape: bf16[17,256], index: 2, kind: input, shape index: {}]
  %s3 = inlined_call_operand.vmem [shape: f32[1,256], index: 3, kind: input, shape index: {}]
  %s4 = inlined_call_operand.hbm [shape: bf16[256,256], index: 4, kind: input, shape index: {}]
  %s5 = inlined_call_operand.vmem [shape: f32[1,256], index: 5, kind: input, shape index: {}]
  %s6 = inlined_call_operand.hbm [shape: bf16[256,128], index: 6, kind: input, shape index: {}]
  %s7 = inlined_call_operand.vmem [shape: f32[1,128], index: 7, kind: input, shape index: {}]
  %s8 = inlined_call_operand.hbm [shape: f32[8,128], index: 8, kind: output, shape index: {}]
  %s9 = sld [smem:[#allocation0]]
  $region58: #{tpu_custom_call.1} parent=0
    _
  %s11 = ssub.s32 1, %s9
  %s12 = scalar_select 0, %s11, %s9
  %13 = sst [smem:[#allocation2]] %s0
  $region1: #{tpu_custom_call.1} parent=0
    #allocation3 [shape = 'u8[4096]{0}', space=vmem, size = 0x1000, scoped, tag = 'input window, operand 1, single buffered']
    #allocation4 [shape = 's32[1]{0}', space=sflag, size = 0x4, scoped, tag = 'scoped memory for tpu_custom_call.1']
    #allocation5 [shape = 's32[1]{0}', space=sflag, size = 0x4, scoped, tag = 'scoped memory for tpu_custom_call.1']
    #allocation6 [shape = 'u8[12288]{0}', space=vmem, size = 0x3000, scoped, tag = 'input window, operand 2, single buffered']
    #allocation7 [shape = 's32[1]{0}', space=sflag, size = 0x4, scoped, tag = 'scoped memory for tpu_custom_call.1']
    #allocation8 [shape = 'u8[131072]{0}', space=vmem, size = 0x20000, scoped, tag = 'input window, operand 4, single buffered']
    #allocation9 [shape = 'u8[65536]{0}', space=vmem, size = 0x10000, scoped, tag = 'input window, operand 6, single buffered']
    #allocation10 [shape = 's32[1]{0}', space=sflag, size = 0x4, scoped, tag = 'scoped memory for tpu_custom_call.1']
    #allocation11 [shape = 'u8[4096]{0}', space=vmem, size = 0x1000, scoped, tag = 'output window, operand 0, single buffered']
    %14 = vsyncpa [#allocation4], 0
    %15 = vsyncpa [#allocation7], 0
    %16 = vsyncpa [#allocation10], 0
    %17 = vsyncpa [#allocation5], 0
    // Predicated region
    $region2: #{tpu_custom_call.1} parent=1 // pred_check
      _
    $region3: #{tpu_custom_call.1} parent=1 // pred_check_branch
      %19 = sbr.rel (0) target = $region5
    $region4: #{tpu_custom_call.1} parent=1 // pred_region
      _
    $region5: #{tpu_custom_call.1} parent=1 // pred_fallthru
      _
    // Predicated region
    $region6: #{tpu_custom_call.1} parent=1 // pred_check
      _
    $region7: #{tpu_custom_call.1} parent=1 // pred_check_branch
      %21 = sbr.rel (0) target = $region9
    $region8: #{tpu_custom_call.1} parent=1 // pred_region
      %s23 = ssub.s32 128, 128
      %24 = vsyncadd [#allocation4], %s23
      %s26 = sshll.u32 [#allocation3], 4
      %s27 = int_to_ptr.vmem [resolvable:$true] %s26
      %29 = dma.hbm_to_vmem [thread:$0]  %s1, 128, %s27, [#allocation4]
    $region9: #{tpu_custom_call.1} parent=1 // pred_fallthru
      _
    // Predicated region
    $region10: #{tpu_custom_call.1} parent=1 // pred_check
      _
    $region11: #{tpu_custom_call.1} parent=1 // pred_check_branch
      %31 = sbr.rel (0) target = $region13
    $region12: #{tpu_custom_call.1} parent=1 // pred_region
      %s33 = ssub.s32 384, 384
      %34 = vsyncadd [#allocation7], %s33
      %s35 = sshll.u32 [#allocation6], 4
      %s36 = int_to_ptr.vmem [resolvable:$true] %s35
      %41 = dma.hbm_to_vmem [thread:$0]  %s2, 384, %s36, [#allocation7], 128, 128, 8
    $region13: #{tpu_custom_call.1} parent=1 // pred_fallthru
      _
    // Predicated region
    $region14: #{tpu_custom_call.1} parent=1 // pred_check
      _
    $region15: #{tpu_custom_call.1} parent=1 // pred_check_branch
      %43 = sbr.rel (0) target = $region17
    $region16: #{tpu_custom_call.1} parent=1 // pred_region
      _
    $region17: #{tpu_custom_call.1} parent=1 // pred_fallthru
      _
    // Predicated region
    $region18: #{tpu_custom_call.1} parent=1 // pred_check
      _
    $region19: #{tpu_custom_call.1} parent=1 // pred_check_branch
      %45 = sbr.rel (0) target = $region21
    $region20: #{tpu_custom_call.1} parent=1 // pred_region
      %s47 = ssub.s32 4096, 4096
      %48 = vsyncadd [#allocation7], %s47
      %s49 = sshll.u32 [#allocation8], 4
      %s50 = int_to_ptr.vmem [resolvable:$true] %s49
      %55 = dma.hbm_to_vmem [thread:$0]  %s4, 4096, %s50, [#allocation7], 128, 128, 8
    $region21: #{tpu_custom_call.1} parent=1 // pred_fallthru
      _
    // Predicated region
    $region22: #{tpu_custom_call.1} parent=1 // pred_check
      _
    $region23: #{tpu_custom_call.1} parent=1 // pred_check_branch
      %57 = sbr.rel (0) target = $region25
    $region24: #{tpu_custom_call.1} parent=1 // pred_region
      _
    $region25: #{tpu_custom_call.1} parent=1 // pred_fallthru
      _
    // Predicated region
    $region26: #{tpu_custom_call.1} parent=1 // pred_check
      _
    $region27: #{tpu_custom_call.1} parent=1 // pred_check_branch
      %59 = sbr.rel (0) target = $region29
    $region28: #{tpu_custom_call.1} parent=1 // pred_region
      %s61 = ssub.s32 2048, 2048
      %62 = vsyncadd [#allocation10], %s61
      %s63 = sshll.u32 [#allocation9], 4
      %s64 = int_to_ptr.vmem [resolvable:$true] %s63
      %69 = dma.hbm_to_vmem [thread:$0]  %s6, 2048, %s64, [#allocation10], 64, 64, 4
    $region29: #{tpu_custom_call.1} parent=1 // pred_fallthru
      _
    // Predicated region
    $region30: #{tpu_custom_call.1} parent=1 // pred_check
      _
    $region31: #{tpu_custom_call.1} parent=1 // pred_check_branch
      %71 = sbr.rel (0) target = $region33
    $region32: #{tpu_custom_call.1} parent=1 // pred_region
      _
    $region33: #{tpu_custom_call.1} parent=1 // pred_fallthru
      _
    // Predicated region
    $region34: #{tpu_custom_call.1} parent=1 // pred_check
      _
    $region35: #{tpu_custom_call.1} parent=1 // pred_check_branch
      %73 = sbr.rel (0) target = $region37
    $region36: #{tpu_custom_call.1} parent=1 // pred_region
      %74 = dma.done [#allocation4], 128
    $region37: #{tpu_custom_call.1} parent=1 // pred_fallthru
      _
    // Predicated region
    $region38: #{tpu_custom_call.1} parent=1 // pred_check
      _
    $region39: #{tpu_custom_call.1} parent=1 // pred_check_branch
      %76 = sbr.rel (0) target = $region41
    $region40: #{tpu_custom_call.1} parent=1 // pred_region
      %77 = dma.done [#allocation7], 384
    $region41: #{tpu_custom_call.1} parent=1 // pred_fallthru
      _
    // Predicated region
    $region42: #{tpu_custom_call.1} parent=1 // pred_check
      _
    $region43: #{tpu_custom_call.1} parent=1 // pred_check_branch
      %79 = sbr.rel (0) target = $region45
    $region44: #{tpu_custom_call.1} parent=1 // pred_region
      %80 = dma.done [#allocation7], 4096
    $region45: #{tpu_custom_call.1} parent=1 // pred_fallthru
      _
    // Predicated region
    $region46: #{tpu_custom_call.1} parent=1 // pred_check
      _
    $region47: #{tpu_custom_call.1} parent=1 // pred_check_branch
      %82 = sbr.rel (0) target = $region49
    $region48: #{tpu_custom_call.1} parent=1 // pred_region
      %83 = dma.done [#allocation10], 2048
    $region49: #{tpu_custom_call.1} parent=1 // pred_fallthru
      _
    %s85 = sld [smem:[#allocation2]]
    %v86 = vld [vmem:[#allocation3] sm:$0xff]
    %v87 = vpack.c.bf16 %v86, %v86
    %v88 = vld [vmem:[#allocation6] sm:$0xff]
    %v89 = vld [vmem:[#allocation6 + $0x8] sm:$0xff]
    %v90 = vld [vmem:[#allocation6 + $0x10] sm:$0x11]
    %v91 = vld [vmem:[%s3] sm:$0x3]
    %v93 = vlaneseq
    %v94 = vshrl.u32 %v93, 7
    %v95 = vsub.s32 0, %v94
    %v96 = vrot.slane %v91, %v95
    %v97 = vlaneseq
    %v98 = vshrl.u32 %v97, 7
    %v99 = vsub.s32 1, %v98
    %v100 = vrot.slane %v91, %v99
    %v106 = vunpack.c.l.b16 %v88
    %v107 = vunpack.c.h.b16 %v88
    %v108 = vunpack.c.l.b16 %v89
    %v109 = vunpack.c.h.b16 %v89
    %v110 = vunpack.c.l.b16 %v90
    %v111 = vunpack.c.h.b16 %v90
    %v112 = vpack.c.b16 %v108, %v106
    %v113 = vpack.c.b16 %v109, %v107
    %v114 = vpack.c.b16 %v110, %v110
    %v115 = vpack.c.b16 %v111, %v111
    %vm118 = vcmask 138240
    %v120 = vsel %vm118, %v87, 0
    %vm122 = vcmask 1040384
    %v123 = vsel 0, 4294967295, 65535
    %v124 = vsel %vm122, %v123, 0
    %v126 = vand.u32 %v114, %v124
    %v129 = vand.u32 %v115, %v124
    %131 = vmatprep.subr.bf16.mxu0 %v113
    %132 = vmatpush1.bf16.msra.mxu0 %v112
    %133 = vmatprep.subr.bf16.mxu0 %v129
    %134 = vmatpush1.bf16.msra.mxu0 %v126
    %135 = vmatprep.subr.bf16.mxu0 0
    %136 = vmatpush1.bf16.msra.mxu0 0
    %137 = vmatprep.subr.bf16.mxu0 0
    %138 = vmatpush1.bf16.msra.mxu0 0
    %139 = vmatprep.subr.bf16.mxu0 0
    %140 = vmatpush1.bf16.msra.mxu0 0
    %141 = vmatprep.subr.bf16.mxu0 0
    %142 = vmatpush1.bf16.msra.mxu0 0
    %143 = vmatprep.subr.bf16.mxu0 0
    %144 = vmatpush1.bf16.msra.mxu0 0
    %145 = vmatprep.subr.bf16.mxu0 0
    %146 = vmatpush1.bf16.msra.mxu0 0
    %147 = vmatprep.subr.bf16.mxu0 0
    %148 = vmatpush1.bf16.msra.mxu0 0
    %149 = vmatprep.subr.bf16.mxu0 0
    %150 = vmatpush1.bf16.msra.mxu0 0
    %151 = vmatprep.subr.bf16.mxu0 0
    %152 = vmatpush1.bf16.msra.mxu0 0
    %153 = vmatprep.subr.bf16.mxu0 0
    %154 = vmatpush1.bf16.msra.mxu0 0
    %155 = vmatprep.subr.bf16.mxu0 0
    %156 = vmatpush1.bf16.msra.mxu0 0
    %157 = vmatprep.subr.bf16.mxu0 0
    %158 = vmatpush1.bf16.msra.mxu0 0
    %159 = vmatprep.subr.bf16.mxu0 0
    %160 = vmatpush1.bf16.msra.mxu0 0
    %161 = vmatprep.subr.bf16.mxu0 0
    %162 = vmatpush1.bf16.msra.mxu0 0
    %163 = vmatprep.mubr.bf16.mxu0 0
    %164 = vmatmul.mubr.bf16.gmra.mrb[0].mxu0 %v120
    %v165 = vpop.f32.mrb[0].mxu0
    %v166 = vadd.f32 %v96, %v165
    %v167 = vpop.f32.mrb[0].mxu0
    %v168 = vadd.f32 %v100, %v167
    %v169 = vpop.f32.mrb[0].mxu0
    %v170 = vpop.f32.mrb[0].mxu0
    %171 = vdwg.mxu0
    %v172 = vmax.f32 %v166, 0.0
    %v173 = vmax.f32 %v168, 0.0
    %v174 = vpack.c.bf16 %v172, %v172
    %v175 = vpack.c.bf16 %v173, %v173
    %v176 = vld [vmem:[#allocation8] sm:$0xff]
    %v177 = vld [vmem:[#allocation8 + $0x8] sm:$0xff]
    %v178 = vld [vmem:[#allocation8 + $0x10] sm:$0xff]
    %v179 = vld [vmem:[#allocation8 + $0x18] sm:$0xff]
    %v180 = vld [vmem:[#allocation8 + $0x20] sm:$0xff]
    %v181 = vld [vmem:[#allocation8 + $0x28] sm:$0xff]
    %v182 = vld [vmem:[#allocation8 + $0x30] sm:$0xff]
    %v183 = vld [vmem:[#allocation8 + $0x38] sm:$0xff]
    %v184 = vld [vmem:[#allocation8 + $0x40] sm:$0xff]
    %v185 = vld [vmem:[#allocation8 + $0x48] sm:$0xff]
    %v186 = vld [vmem:[#allocation8 + $0x50] sm:$0xff]
    %v187 = vld [vmem:[#allocation8 + $0x58] sm:$0xff]
    %v188 = vld [vmem:[#allocation8 + $0x60] sm:$0xff]
    %v189 = vld [vmem:[#allocation8 + $0x68] sm:$0xff]
    %v190 = vld [vmem:[#allocation8 + $0x70] sm:$0xff]
    %v191 = vld [vmem:[#allocation8 + $0x78] sm:$0xff]
    %v192 = vld [vmem:[#allocation8 + $0x80] sm:$0xff]
    %v193 = vld [vmem:[#allocation8 + $0x88] sm:$0xff]
    %v194 = vld [vmem:[#allocation8 + $0x90] sm:$0xff]
    %v195 = vld [vmem:[#allocation8 + $0x98] sm:$0xff]
    %v196 = vld [vmem:[#allocation8 + $0xa0] sm:$0xff]
    %v197 = vld [vmem:[#allocation8 + $0xa8] sm:$0xff]
    %v198 = vld [vmem:[#allocation8 + $0xb0] sm:$0xff]
    %v199 = vld [vmem:[#allocation8 + $0xb8] sm:$0xff]
    %v200 = vld [vmem:[#allocation8 + $0xc0] sm:$0xff]
    %v201 = vld [vmem:[#allocation8 + $0xc8] sm:$0xff]
    %v202 = vld [vmem:[#allocation8 + $0xd0] sm:$0xff]
    %v203 = vld [vmem:[#allocation8 + $0xd8] sm:$0xff]
    %v204 = vld [vmem:[#allocation8 + $0xe0] sm:$0xff]
    %v205 = vld [vmem:[#allocation8 + $0xe8] sm:$0xff]
    %v206 = vld [vmem:[#allocation8 + $0xf0] sm:$0xff]
    %v207 = vld [vmem:[#allocation8 + $0xf8] sm:$0xff]
    %v208 = vld [vmem:[%s5] sm:$0x3]
    %v210 = vlaneseq
    %v211 = vshrl.u32 %v210, 7
    %v212 = vsub.s32 0, %v211
    %v213 = vrot.slane %v208, %v212
    %v214 = vlaneseq
    %v215 = vshrl.u32 %v214, 7
    %v216 = vsub.s32 1, %v215
    %v217 = vrot.slane %v208, %v216
    %v252 = vunpack.c.l.b16 %v176
    %v253 = vunpack.c.h.b16 %v176
    %v254 = vunpack.c.l.b16 %v177
    %v255 = vunpack.c.h.b16 %v177
    %v256 = vunpack.c.l.b16 %v178
    %v257 = vunpack.c.h.b16 %v178
    %v258 = vunpack.c.l.b16 %v179
    %v259 = vunpack.c.h.b16 %v179
    %v260 = vunpack.c.l.b16 %v180
    %v261 = vunpack.c.h.b16 %v180
    %v262 = vunpack.c.l.b16 %v181
    %v263 = vunpack.c.h.b16 %v181
    %v264 = vunpack.c.l.b16 %v182
    %v265 = vunpack.c.h.b16 %v182
    %v266 = vunpack.c.l.b16 %v183
    %v267 = vunpack.c.h.b16 %v183
    %v268 = vunpack.c.l.b16 %v184
    %v269 = vunpack.c.h.b16 %v184
    %v270 = vunpack.c.l.b16 %v185
    %v271 = vunpack.c.h.b16 %v185
    %v272 = vunpack.c.l.b16 %v186
    %v273 = vunpack.c.h.b16 %v186
    %v274 = vunpack.c.l.b16 %v187
    %v275 = vunpack.c.h.b16 %v187
    %v276 = vunpack.c.l.b16 %v188
    %v277 = vunpack.c.h.b16 %v188
    %v278 = vunpack.c.l.b16 %v189
    %v279 = vunpack.c.h.b16 %v189
    %v280 = vunpack.c.l.b16 %v190
    %v281 = vunpack.c.h.b16 %v190
    %v282 = vunpack.c.l.b16 %v191
    %v283 = vunpack.c.h.b16 %v191
    %v284 = vunpack.c.l.b16 %v192
    %v285 = vunpack.c.h.b16 %v192
    %v286 = vunpack.c.l.b16 %v193
    %v287 = vunpack.c.h.b16 %v193
    %v288 = vunpack.c.l.b16 %v194
    %v289 = vunpack.c.h.b16 %v194
    %v290 = vunpack.c.l.b16 %v195
    %v291 = vunpack.c.h.b16 %v195
    %v292 = vunpack.c.l.b16 %v196
    %v293 = vunpack.c.h.b16 %v196
    %v294 = vunpack.c.l.b16 %v197
    %v295 = vunpack.c.h.b16 %v197
    %v296 = vunpack.c.l.b16 %v198
    %v297 = vunpack.c.h.b16 %v198
    %v298 = vunpack.c.l.b16 %v199
    %v299 = vunpack.c.h.b16 %v199
    %v300 = vunpack.c.l.b16 %v200
    %v301 = vunpack.c.h.b16 %v200
    %v302 = vunpack.c.l.b16 %v201
    %v303 = vunpack.c.h.b16 %v201
    %v304 = vunpack.c.l.b16 %v202
    %v305 = vunpack.c.h.b16 %v202
    %v306 = vunpack.c.l.b16 %v203
    %v307 = vunpack.c.h.b16 %v203
    %v308 = vunpack.c.l.b16 %v204
    %v309 = vunpack.c.h.b16 %v204
    %v310 = vunpack.c.l.b16 %v205
    %v311 = vunpack.c.h.b16 %v205
    %v312 = vunpack.c.l.b16 %v206
    %v313 = vunpack.c.h.b16 %v206
    %v314 = vunpack.c.l.b16 %v207
    %v315 = vunpack.c.h.b16 %v207
    %v316 = vpack.c.b16 %v254, %v252
    %v317 = vpack.c.b16 %v255, %v253
    %v318 = vpack.c.b16 %v258, %v256
    %v319 = vpack.c.b16 %v259, %v257
    %v320 = vpack.c.b16 %v262, %v260
    %v321 = vpack.c.b16 %v263, %v261
    %v322 = vpack.c.b16 %v266, %v264
    %v323 = vpack.c.b16 %v267, %v265
    %v324 = vpack.c.b16 %v270, %v268
    %v325 = vpack.c.b16 %v271, %v269
    %v326 = vpack.c.b16 %v274, %v272
    %v327 = vpack.c.b16 %v275, %v273
    %v328 = vpack.c.b16 %v278, %v276
    %v329 = vpack.c.b16 %v279, %v277
    %v330 = vpack.c.b16 %v282, %v280
    %v331 = vpack.c.b16 %v283, %v281
    %v332 = vpack.c.b16 %v286, %v284
    %v333 = vpack.c.b16 %v287, %v285
    %v334 = vpack.c.b16 %v290, %v288
    %v335 = vpack.c.b16 %v291, %v289
    %v336 = vpack.c.b16 %v294, %v292
    %v337 = vpack.c.b16 %v295, %v293
    %v338 = vpack.c.b16 %v298, %v296
    %v339 = vpack.c.b16 %v299, %v297
    %v340 = vpack.c.b16 %v302, %v300
    %v341 = vpack.c.b16 %v303, %v301
    %v342 = vpack.c.b16 %v306, %v304
    %v343 = vpack.c.b16 %v307, %v305
    %v344 = vpack.c.b16 %v310, %v308
    %v345 = vpack.c.b16 %v311, %v309
    %v346 = vpack.c.b16 %v314, %v312
    %v347 = vpack.c.b16 %v315, %v313
    %380 = vmatprep.subr.bf16.mxu0 %v317
    %381 = vmatpush1.bf16.msra.mxu0 %v316
    %382 = vmatprep.subr.bf16.mxu0 %v319
    %383 = vmatpush1.bf16.msra.mxu0 %v318
    %384 = vmatprep.subr.bf16.mxu0 %v321
    %385 = vmatpush1.bf16.msra.mxu0 %v320
    %386 = vmatprep.subr.bf16.mxu0 %v323
    %387 = vmatpush1.bf16.msra.mxu0 %v322
    %388 = vmatprep.subr.bf16.mxu0 %v325
    %389 = vmatpush1.bf16.msra.mxu0 %v324
    %390 = vmatprep.subr.bf16.mxu0 %v327
    %391 = vmatpush1.bf16.msra.mxu0 %v326
    %392 = vmatprep.subr.bf16.mxu0 %v329
    %393 = vmatpush1.bf16.msra.mxu0 %v328
    %394 = vmatprep.subr.bf16.mxu0 %v331
    %395 = vmatpush1.bf16.msra.mxu0 %v330
    %396 = vmatprep.subr.bf16.mxu0 %v333
    %397 = vmatpush1.bf16.msra.mxu0 %v332
    %398 = vmatprep.subr.bf16.mxu0 %v335
    %399 = vmatpush1.bf16.msra.mxu0 %v334
    %400 = vmatprep.subr.bf16.mxu0 %v337
    %401 = vmatpush1.bf16.msra.mxu0 %v336
    %402 = vmatprep.subr.bf16.mxu0 %v339
    %403 = vmatpush1.bf16.msra.mxu0 %v338
    %404 = vmatprep.subr.bf16.mxu0 %v341
    %405 = vmatpush1.bf16.msra.mxu0 %v340
    %406 = vmatprep.subr.bf16.mxu0 %v343
    %407 = vmatpush1.bf16.msra.mxu0 %v342
    %408 = vmatprep.subr.bf16.mxu0 %v345
    %409 = vmatpush1.bf16.msra.mxu0 %v344
    %410 = vmatprep.subr.bf16.mxu0 %v347
    %411 = vmatpush1.bf16.msra.mxu0 %v346
    %412 = vmatprep.mubr.bf16.mxu0 %v175
    %413 = vmatmul.mubr.bf16.gmra.mrb[0].mxu0 %v174
    %v414 = vpop.f32.mrb[0].mxu0
    %v415 = vadd.f32 %v213, %v414
    %v416 = vpop.f32.mrb[0].mxu0
    %v417 = vadd.f32 %v217, %v416
    %v418 = vpop.f32.mrb[0].mxu0
    %v419 = vpop.f32.mrb[0].mxu0
    %420 = vdwg.mxu0
    %v421 = vmax.f32 %v415, 0.0
    %v422 = vmax.f32 %v417, 0.0
    %v423 = vpack.c.bf16 %v421, %v421
    %v424 = vpack.c.bf16 %v422, %v422
    %v425 = vld [vmem:[#allocation9] sm:$0xf]
    %v426 = vld [vmem:[#allocation9 + $0x4] sm:$0xf]
    %v427 = vld [vmem:[#allocation9 + $0x8] sm:$0xf]
    %v428 = vld [vmem:[#allocation9 + $0xc] sm:$0xf]
    %v429 = vld [vmem:[#allocation9 + $0x10] sm:$0xf]
    %v430 = vld [vmem:[#allocation9 + $0x14] sm:$0xf]
    %v431 = vld [vmem:[#allocation9 + $0x18] sm:$0xf]
    %v432 = vld [vmem:[#allocation9 + $0x1c] sm:$0xf]
    %v433 = vld [vmem:[#allocation9 + $0x20] sm:$0xf]
    %v434 = vld [vmem:[#allocation9 + $0x24] sm:$0xf]
    %v435 = vld [vmem:[#allocation9 + $0x28] sm:$0xf]
    %v436 = vld [vmem:[#allocation9 + $0x2c] sm:$0xf]
    %v437 = vld [vmem:[#allocation9 + $0x30] sm:$0xf]
    %v438 = vld [vmem:[#allocation9 + $0x34] sm:$0xf]
    %v439 = vld [vmem:[#allocation9 + $0x38] sm:$0xf]
    %v440 = vld [vmem:[#allocation9 + $0x3c] sm:$0xf]
    %v441 = vld [vmem:[#allocation9 + $0x40] sm:$0xf]
    %v442 = vld [vmem:[#allocation9 + $0x44] sm:$0xf]
    %v443 = vld [vmem:[#allocation9 + $0x48] sm:$0xf]
    %v444 = vld [vmem:[#allocation9 + $0x4c] sm:$0xf]
    %v445 = vld [vmem:[#allocation9 + $0x50] sm:$0xf]
    %v446 = vld [vmem:[#allocation9 + $0x54] sm:$0xf]
    %v447 = vld [vmem:[#allocation9 + $0x58] sm:$0xf]
    %v448 = vld [vmem:[#allocation9 + $0x5c] sm:$0xf]
    %v449 = vld [vmem:[#allocation9 + $0x60] sm:$0xf]
    %v450 = vld [vmem:[#allocation9 + $0x64] sm:$0xf]
    %v451 = vld [vmem:[#allocation9 + $0x68] sm:$0xf]
    %v452 = vld [vmem:[#allocation9 + $0x6c] sm:$0xf]
    %v453 = vld [vmem:[#allocation9 + $0x70] sm:$0xf]
    %v454 = vld [vmem:[#allocation9 + $0x74] sm:$0xf]
    %v455 = vld [vmem:[#allocation9 + $0x78] sm:$0xf]
    %v456 = vld [vmem:[#allocation9 + $0x7c] sm:$0xf]
    %v457 = vld [vmem:[%s7] sm:$0x1]
    %v459 = vlaneseq
    %v460 = vshrl.u32 %v459, 7
    %v461 = vsub.s32 0, %v460
    %v462 = vrot.slane %v457, %v461
    %v496 = vunpack.c.l.b16 %v425
    %v497 = vunpack.c.l.b16 %v426
    %v498 = vunpack.c.l.b16 %v427
    %v499 = vunpack.c.l.b16 %v428
    %v500 = vunpack.c.l.b16 %v429
    %v501 = vunpack.c.l.b16 %v430
    %v502 = vunpack.c.l.b16 %v431
    %v503 = vunpack.c.l.b16 %v432
    %v504 = vunpack.c.l.b16 %v433
    %v505 = vunpack.c.l.b16 %v434
    %v506 = vunpack.c.l.b16 %v435
    %v507 = vunpack.c.l.b16 %v436
    %v508 = vunpack.c.l.b16 %v437
    %v509 = vunpack.c.l.b16 %v438
    %v510 = vunpack.c.l.b16 %v439
    %v511 = vunpack.c.l.b16 %v440
    %v512 = vunpack.c.l.b16 %v441
    %v513 = vunpack.c.l.b16 %v442
    %v514 = vunpack.c.l.b16 %v443
    %v515 = vunpack.c.l.b16 %v444
    %v516 = vunpack.c.l.b16 %v445
    %v517 = vunpack.c.l.b16 %v446
    %v518 = vunpack.c.l.b16 %v447
    %v519 = vunpack.c.l.b16 %v448
    %v520 = vunpack.c.l.b16 %v449
    %v521 = vunpack.c.l.b16 %v450
    %v522 = vunpack.c.l.b16 %v451
    %v523 = vunpack.c.l.b16 %v452
    %v524 = vunpack.c.l.b16 %v453
    %v525 = vunpack.c.l.b16 %v454
    %v526 = vunpack.c.l.b16 %v455
    %v527 = vunpack.c.l.b16 %v456
    %v528 = vpack.c.b16 %v497, %v496
    %v529 = vpack.c.b16 %v499, %v498
    %v530 = vpack.c.b16 %v501, %v500
    %v531 = vpack.c.b16 %v503, %v502
    %v532 = vpack.c.b16 %v505, %v504
    %v533 = vpack.c.b16 %v507, %v506
    %v534 = vpack.c.b16 %v509, %v508
    %v535 = vpack.c.b16 %v511, %v510
    %v536 = vpack.c.b16 %v513, %v512
    %v537 = vpack.c.b16 %v515, %v514
    %v538 = vpack.c.b16 %v517, %v516
    %v539 = vpack.c.b16 %v519, %v518
    %v540 = vpack.c.b16 %v521, %v520
    %v541 = vpack.c.b16 %v523, %v522
    %v542 = vpack.c.b16 %v525, %v524
    %v543 = vpack.c.b16 %v527, %v526
    %560 = vmatprep.subr.bf16.mxu0 0
    %561 = vmatpush1.bf16.msra.mxu0 %v528
    %562 = vmatprep.subr.bf16.mxu0 0
    %563 = vmatpush1.bf16.msra.mxu0 %v529
    %564 = vmatprep.subr.bf16.mxu0 0
    %565 = vmatpush1.bf16.msra.mxu0 %v530
    %566 = vmatprep.subr.bf16.mxu0 0
    %567 = vmatpush1.bf16.msra.mxu0 %v531
    %568 = vmatprep.subr.bf16.mxu0 0
    %569 = vmatpush1.bf16.msra.mxu0 %v532
    %570 = vmatprep.subr.bf16.mxu0 0
    %571 = vmatpush1.bf16.msra.mxu0 %v533
    %572 = vmatprep.subr.bf16.mxu0 0
    %573 = vmatpush1.bf16.msra.mxu0 %v534
    %574 = vmatprep.subr.bf16.mxu0 0
    %575 = vmatpush1.bf16.msra.mxu0 %v535
    %576 = vmatprep.subr.bf16.mxu0 0
    %577 = vmatpush1.bf16.msra.mxu0 %v536
    %578 = vmatprep.subr.bf16.mxu0 0
    %579 = vmatpush1.bf16.msra.mxu0 %v537
    %580 = vmatprep.subr.bf16.mxu0 0
    %581 = vmatpush1.bf16.msra.mxu0 %v538
    %582 = vmatprep.subr.bf16.mxu0 0
    %583 = vmatpush1.bf16.msra.mxu0 %v539
    %584 = vmatprep.subr.bf16.mxu0 0
    %585 = vmatpush1.bf16.msra.mxu0 %v540
    %586 = vmatprep.subr.bf16.mxu0 0
    %587 = vmatpush1.bf16.msra.mxu0 %v541
    %588 = vmatprep.subr.bf16.mxu0 0
    %589 = vmatpush1.bf16.msra.mxu0 %v542
    %590 = vmatprep.subr.bf16.mxu0 0
    %591 = vmatpush1.bf16.msra.mxu0 %v543
    %592 = vmatprep.mubr.bf16.mxu0 %v424
    %593 = vmatmul.mubr.bf16.gmra.mrb[0].mxu0 %v423
    %v594 = vpop.f32.mrb[0].mxu0
    %v595 = vadd.f32 %v462, %v594
    %v596 = vpop.f32.mrb[0].mxu0
    %v597 = vpop.f32.mrb[0].mxu0
    %v598 = vpop.f32.mrb[0].mxu0
    %599 = vdwg.mxu0
    %v600 = vtanh.pop %v595
    %v601 = vstv %s85
    %v602 = vmul.f32 %v601, %v600
    %603 = vst [vmem:[#allocation11] sm:$0xff] %v602
    // Predicated region
    $region50: #{tpu_custom_call.1} parent=1 // pred_check
      _
    $region51: #{tpu_custom_call.1} parent=1 // pred_check_branch
      %605 = sbr.rel (0) target = $region53
    $region52: #{tpu_custom_call.1} parent=1 // pred_region
      %s607 = ssub.s32 128, 128
      %608 = vsyncadd [#allocation5], %s607
      %s610 = sshll.u32 [#allocation11], 4
      %s611 = int_to_ptr.vmem [resolvable:$true] %s610
      %613 = dma.vmem_to_hbm [thread:$0]  %s611, 128, %s8, [#allocation5]
    $region53: #{tpu_custom_call.1} parent=1 // pred_fallthru
      _
    // Predicated region
    $region54: #{tpu_custom_call.1} parent=1 // pred_check
      _
    $region55: #{tpu_custom_call.1} parent=1 // pred_check_branch
      %615 = sbr.rel (0) target = $region57
    $region56: #{tpu_custom_call.1} parent=1 // pred_region
      %616 = dma.done [#allocation5], 128
    $region57: #{tpu_custom_call.1} parent=1 // pred_fallthru
      _
    %617 = vsyncpa [#allocation4], 1
    %618 = vsyncpa [#allocation7], 1
    %619 = vsyncpa [#allocation10], 1
    %620 = vsyncpa [#allocation5], 1

</llo_original>
